<compile_context>
chip_gen: v7x
topology: tpu7x:2x2x1
jax: 0.10.0
libtpu: 0.0.40
codegen_flags: <defaults>
</compile_context>

<pallas_src>
import jax
import jax.numpy as jnp
from jax.experimental import pallas as pl
from jax.experimental.pallas import tpu as pltpu


def standardnet_kernel(p_ref, x_ref, o_ref):
    # p_ref: SMEM f32[17] = [w1 (2x4 row-major) | b1 (4) | w2 (4) | b2 (1)]
    # x_ref: VMEM f32[2, TB]  (features on sublanes, batch on lanes)
    # o_ref: VMEM f32[1, TB]
    x0 = x_ref[0:1, :]                      # (1, TB)
    x1 = x_ref[1:2, :]                      # (1, TB)

    y = jnp.zeros_like(x0)                  # layer-2 accumulator, (1, TB)
    # Fully unrolled VPU FMAs over the 4 hidden units (no MXU).
    for j in range(4):
        w1_0j = p_ref[0 * 4 + j]            # scalar reads from SMEM
        w1_1j = p_ref[1 * 4 + j]
        b1_j = p_ref[8 + j]
        w2_j = p_ref[12 + j]
        h_j = jnp.maximum(x0 * w1_0j + x1 * w1_1j + b1_j, 0.0)   # Linear(2->4)+ReLU
        y = y + h_j * w2_j                                       # Linear(4->1)
    y = y + p_ref[16]                                            # + b2

    # Sigmoid (exp goes to the EUP slot; VALU has plenty of slack here).
    o_ref[...] = jax.nn.sigmoid(y).astype(o_ref.dtype)


def standardnet_forward(x, w1, b1, w2, b2, *, tb=512):
    """x: (B, 2) f32; w1: (2,4); b1: (4,); w2: (4,1); b2: (1,). Returns (B, 1) f32."""
    B = x.shape[0]
    tb = max(128, (tb // 128) * 128)                # lane tile must be multiple of 128
    b_pad = ((B + tb - 1) // tb) * tb

    # Lane-dense layout: batch on the last (lane) axis, zero-padded to the tile grid.
    xt = jnp.zeros((2, b_pad), jnp.float32).at[:, :B].set(x.astype(jnp.float32).T)

    # Flatten all parameters into one tiny SMEM-resident array.
    params = jnp.concatenate(
        [w1.reshape(-1), b1.reshape(-1), w2.reshape(-1), b2.reshape(-1)]
    ).astype(jnp.float32)                           # (17,)

    grid = (b_pad // tb,)
    out = pl.pallas_call(
        standardnet_kernel,
        out_shape=jax.ShapeDtypeStruct((1, b_pad), jnp.float32),
        grid=grid,
        in_specs=[
            pl.BlockSpec(memory_space=pltpu.MemorySpace.SMEM),   # params: whole array in SMEM
            pl.BlockSpec((2, tb), lambda i: (0, i)),             # x^T tile, batch on lanes
        ],
        out_specs=pl.BlockSpec((1, tb), lambda i: (0, i)),       # lane-dense output slab
        compiler_params=pltpu.CompilerParams(
            dimension_semantics=("parallel",),                   # shard batch across TCs (v7x)
        ),
    )(params, xt)

    return out[0, :B].reshape(B, 1)


def init_params(key):
    """Deterministic init mimicking nn.Linear defaults: U(-1/sqrt(fan_in), 1/sqrt(fan_in))."""
    k1, k2, k3, k4 = jax.random.split(key, 4)
    bound1 = 1.0 / jnp.sqrt(2.0)  # layer1 fan_in = 2
    bound2 = 1.0 / jnp.sqrt(4.0)  # layer2 fan_in = 4
    w1 = jax.random.uniform(k1, (2, 4), jnp.float32, -bound1, bound1)   # (in, out)
    b1 = jax.random.uniform(k2, (4,), jnp.float32, -bound1, bound1)
    w2 = jax.random.uniform(k3, (4, 1), jnp.float32, -bound2, bound2)   # (in, out)
    b2 = jax.random.uniform(k4, (1,), jnp.float32, -bound2, bound2)
    return w1, b1, w2, b2


def reference_forward(x, w1, b1, w2, b2):
    h = jnp.maximum(x @ w1 + b1, 0.0)
    return jax.nn.sigmoid(h @ w2 + b2)


if __name__ == "__main__":
    key = jax.random.PRNGKey(0)
    kx, kp = jax.random.split(key)
    B = 200  # not a multiple of the tile -> exercises padding + multi-step grid
    x = jax.random.normal(kx, (B, 2), jnp.float32)
    w1, b1, w2, b2 = init_params(kp)

    out = standardnet_forward(x, w1, b1, w2, b2, tb=128)
    out = jax.block_until_ready(out)

    ref = reference_forward(x, w1, b1, w2, b2)
    assert out.shape == (B, 1)
    assert jnp.allclose(out, ref, atol=1e-5, rtol=1e-5)
    print("KERNEL_OK")
</pallas_src>

<mosaic_0001>
module attributes {stable_mosaic.version = 11 : i64} {
  func.func @standardnet_kernel(%arg0: i32, %arg1: memref<17xf32, #tpu.memory_space<smem>>, %arg2: memref<2x128xf32, #tpu.memory_space<vmem>>, %arg3: memref<1x128xf32, #tpu.memory_space<vmem>>) attributes {dimension_semantics = [#tpu.dimension_semantics<parallel>], iteration_bounds = array<i64: 2>, scalar_prefetch = 0 : i64, scratch_operands = 0 : i64, tpu.core_type = #tpu.core_type<tc>, window_params = [{transform_indices = @transform_0, window_bounds = array<i64: 17>}, {transform_indices = @transform_1, window_bounds = array<i64: 2, 128>}, {transform_indices = @transform_2, window_bounds = array<i64: 1, 128>}]} {
    %c0 = arith.constant 0 : index
    %c0_0 = arith.constant 0 : index
    %0 = vector.load %arg2[%c0, %c0_0] : memref<2x128xf32, #tpu.memory_space<vmem>>, vector<1x128xf32>
    %c1 = arith.constant 1 : index
    %c0_1 = arith.constant 0 : index
    %1 = vector.load %arg2[%c1, %c0_1] : memref<2x128xf32, #tpu.memory_space<vmem>>, vector<1x128xf32>
    %cst = arith.constant 0.000000e+00 : f32
    %2 = vector.broadcast %cst : f32 to vector<1x128xf32>
    %c0_2 = arith.constant 0 : index
    %3 = memref.load %arg1[%c0_2] : memref<17xf32, #tpu.memory_space<smem>>
    %c4 = arith.constant 4 : index
    %4 = memref.load %arg1[%c4] : memref<17xf32, #tpu.memory_space<smem>>
    %c8 = arith.constant 8 : index
    %5 = memref.load %arg1[%c8] : memref<17xf32, #tpu.memory_space<smem>>
    %c12 = arith.constant 12 : index
    %6 = memref.load %arg1[%c12] : memref<17xf32, #tpu.memory_space<smem>>
    %7 = vector.broadcast %3 : f32 to vector<1x128xf32>
    %8 = arith.mulf %0, %7 : vector<1x128xf32>
    %9 = vector.broadcast %4 : f32 to vector<1x128xf32>
    %10 = arith.mulf %1, %9 : vector<1x128xf32>
    %11 = arith.addf %8, %10 : vector<1x128xf32>
    %12 = vector.broadcast %5 : f32 to vector<1x128xf32>
    %13 = arith.addf %11, %12 : vector<1x128xf32>
    %cst_3 = arith.constant 0.000000e+00 : f32
    %14 = vector.broadcast %cst_3 : f32 to vector<1x128xf32>
    %15 = arith.maximumf %13, %14 : vector<1x128xf32>
    %16 = vector.broadcast %6 : f32 to vector<1x128xf32>
    %17 = arith.mulf %15, %16 : vector<1x128xf32>
    %18 = arith.addf %2, %17 : vector<1x128xf32>
    %c1_4 = arith.constant 1 : index
    %19 = memref.load %arg1[%c1_4] : memref<17xf32, #tpu.memory_space<smem>>
    %c5 = arith.constant 5 : index
    %20 = memref.load %arg1[%c5] : memref<17xf32, #tpu.memory_space<smem>>
    %c9 = arith.constant 9 : index
    %21 = memref.load %arg1[%c9] : memref<17xf32, #tpu.memory_space<smem>>
    %c13 = arith.constant 13 : index
    %22 = memref.load %arg1[%c13] : memref<17xf32, #tpu.memory_space<smem>>
    %23 = vector.broadcast %19 : f32 to vector<1x128xf32>
    %24 = arith.mulf %0, %23 : vector<1x128xf32>
    %25 = vector.broadcast %20 : f32 to vector<1x128xf32>
    %26 = arith.mulf %1, %25 : vector<1x128xf32>
    %27 = arith.addf %24, %26 : vector<1x128xf32>
    %28 = vector.broadcast %21 : f32 to vector<1x128xf32>
    %29 = arith.addf %27, %28 : vector<1x128xf32>
    %cst_5 = arith.constant 0.000000e+00 : f32
    %30 = vector.broadcast %cst_5 : f32 to vector<1x128xf32>
    %31 = arith.maximumf %29, %30 : vector<1x128xf32>
    %32 = vector.broadcast %22 : f32 to vector<1x128xf32>
    %33 = arith.mulf %31, %32 : vector<1x128xf32>
    %34 = arith.addf %18, %33 : vector<1x128xf32>
    %c2 = arith.constant 2 : index
    %35 = memref.load %arg1[%c2] : memref<17xf32, #tpu.memory_space<smem>>
    %c6 = arith.constant 6 : index
    %36 = memref.load %arg1[%c6] : memref<17xf32, #tpu.memory_space<smem>>
    %c10 = arith.constant 10 : index
    %37 = memref.load %arg1[%c10] : memref<17xf32, #tpu.memory_space<smem>>
    %c14 = arith.constant 14 : index
    %38 = memref.load %arg1[%c14] : memref<17xf32, #tpu.memory_space<smem>>
    %39 = vector.broadcast %35 : f32 to vector<1x128xf32>
    %40 = arith.mulf %0, %39 : vector<1x128xf32>
    %41 = vector.broadcast %36 : f32 to vector<1x128xf32>
    %42 = arith.mulf %1, %41 : vector<1x128xf32>
    %43 = arith.addf %40, %42 : vector<1x128xf32>
    %44 = vector.broadcast %37 : f32 to vector<1x128xf32>
    %45 = arith.addf %43, %44 : vector<1x128xf32>
    %cst_6 = arith.constant 0.000000e+00 : f32
    %46 = vector.broadcast %cst_6 : f32 to vector<1x128xf32>
    %47 = arith.maximumf %45, %46 : vector<1x128xf32>
    %48 = vector.broadcast %38 : f32 to vector<1x128xf32>
    %49 = arith.mulf %47, %48 : vector<1x128xf32>
    %50 = arith.addf %34, %49 : vector<1x128xf32>
    %c3 = arith.constant 3 : index
    %51 = memref.load %arg1[%c3] : memref<17xf32, #tpu.memory_space<smem>>
    %c7 = arith.constant 7 : index
    %52 = memref.load %arg1[%c7] : memref<17xf32, #tpu.memory_space<smem>>
    %c11 = arith.constant 11 : index
    %53 = memref.load %arg1[%c11] : memref<17xf32, #tpu.memory_space<smem>>
    %c15 = arith.constant 15 : index
    %54 = memref.load %arg1[%c15] : memref<17xf32, #tpu.memory_space<smem>>
    %55 = vector.broadcast %51 : f32 to vector<1x128xf32>
    %56 = arith.mulf %0, %55 : vector<1x128xf32>
    %57 = vector.broadcast %52 : f32 to vector<1x128xf32>
    %58 = arith.mulf %1, %57 : vector<1x128xf32>
    %59 = arith.addf %56, %58 : vector<1x128xf32>
    %60 = vector.broadcast %53 : f32 to vector<1x128xf32>
    %61 = arith.addf %59, %60 : vector<1x128xf32>
    %cst_7 = arith.constant 0.000000e+00 : f32
    %62 = vector.broadcast %cst_7 : f32 to vector<1x128xf32>
    %63 = arith.maximumf %61, %62 : vector<1x128xf32>
    %64 = vector.broadcast %54 : f32 to vector<1x128xf32>
    %65 = arith.mulf %63, %64 : vector<1x128xf32>
    %66 = arith.addf %50, %65 : vector<1x128xf32>
    %c16 = arith.constant 16 : index
    %67 = memref.load %arg1[%c16] : memref<17xf32, #tpu.memory_space<smem>>
    %68 = vector.broadcast %67 : f32 to vector<1x128xf32>
    %69 = arith.addf %66, %68 : vector<1x128xf32>
    %70 = arith.negf %69 : vector<1x128xf32>
    %71 = math.exp %70 : vector<1x128xf32>
    %cst_8 = arith.constant 1.000000e+00 : f32
    %72 = vector.broadcast %cst_8 : f32 to vector<1x128xf32>
    %73 = arith.addf %72, %71 : vector<1x128xf32>
    %74 = arith.divf %72, %73 : vector<1x128xf32>
    %c0_9 = arith.constant 0 : index
    %c0_10 = arith.constant 0 : index
    %75 = vector.load %arg3[%c0_9, %c0_10] : memref<1x128xf32, #tpu.memory_space<vmem>>, vector<1x128xf32>
    tpu.vector_store %arg3[%c0_9, %c0_10], %74 {strides = array<i32>} : memref<1x128xf32, #tpu.memory_space<vmem>>, vector<1x128xf32>,
    return
  }
  func.func @transform_0(%arg0: i32) -> i32 {
    %c0_i32 = arith.constant 0 : i32
    %c0_i32_0 = arith.constant 0 : i32
    return %c0_i32 : i32
  }
  func.func @transform_1(%arg0: i32) -> (i32, i32) {
    %c0_i32 = arith.constant 0 : i32
    %c0_i32_0 = arith.constant 0 : i32
    return %c0_i32, %arg0 : i32, i32
  }
  func.func @transform_2(%arg0: i32) -> (i32, i32) {
    %c0_i32 = arith.constant 0 : i32
    %c0_i32_0 = arith.constant 0 : i32
    return %c0_i32, %arg0 : i32, i32
  }
}

</mosaic_0001>

<llo_original>
// kernel: tpu_custom_call.1
$region0: #{tpu_custom_call.1}
  #allocation0 [shape = 'u32[]', space=smem, size = 0x4, offset = 0x4, fixed_abs, tag = 'smem constant byte address 0x4 - core index']
  #allocation1 [shape = 'u32[144,128]{1,0:T(1,128)}', space=vmem, size = 0x12000, scoped, tag = 'internal scratch']
  %s0 = inlined_call_operand.hbm [shape: f32[17], index: 0, kind: input, shape index: {}]
  %s1 = inlined_call_operand.hbm [shape: f32[2,256], index: 1, kind: input, shape index: {}]
  %s2 = inlined_call_operand.hbm [shape: f32[1,256], index: 2, kind: output, shape index: {}]
  %s3 = sld [smem:[#allocation0]]
  $region49: #{tpu_custom_call.1} parent=0
    _
  %s5 = ssub.s32 1, %s3
  %s6 = scalar_select 0, %s5, %s3
  $region1: #{tpu_custom_call.1} parent=0
    #allocation2 [shape = 'u8[512]{0}', space=smem, size = 0x200, scoped, tag = 'input window, operand 0, single buffered']
    #allocation3 [shape = 's32[2]{0}', space=sflag, size = 0x8, scoped, tag = 'scoped memory for tpu_custom_call.1']
    #allocation4 [shape = 's32[2]{0}', space=sflag, size = 0x8, scoped, tag = 'scoped memory for tpu_custom_call.1']
    #allocation5 [shape = 's32[2]{0}', space=sflag, size = 0x8, scoped, tag = 'scoped memory for tpu_custom_call.1']
    #allocation6 [shape = 'u8[2048]{0}', space=vmem, size = 0x800, scoped, tag = 'input window, operand 1']
    #allocation7 [shape = 'u8[1024]{0}', space=vmem, size = 0x400, scoped, tag = 'output window, operand 0']
    %7 = vsyncpa [#allocation5], 0
    %8 = vsyncpa [#allocation3], 0
    %s9 = scalar_lea.sflag [#allocation3], 1
    %10 = vsyncpa %s9, 0
    %11 = vsyncpa [#allocation4], 0
    %s12 = scalar_lea.sflag [#allocation4], 1
    %13 = vsyncpa %s12, 0
    loop: start=0, step=1, limit=4
    $region2: #{tpu_custom_call.1} parent=1 // loop_pre_header
      _
    $region3: #{tpu_custom_call.1} parent=1 // loop_header
      %s15 = sphi 0, %s19
      %p16 = scmp.ge.s32.totalorder %s15, 4
      %s23 = sphi 0, %s23
      %s25 = sphi 0, %s23
      %s26 = sphi 0, %s25
      %s40 = sphi 0, %s26
      %s46 = sphi 0, %s48
      %s49 = sphi 0, %s46
      %s50 = sphi 0, %s49
      %s66 = sphi 0, %s50
      %s72 = sphi 0, %s74
      %s75 = sphi 0, %s72
      %s76 = sphi 0, %s75
      %s92 = sphi 0, %s76
    $region4: #{tpu_custom_call.1} parent=1 // loop_header_branch
      %18 = sbr.rel (%p16) target = $region8
    $region5: #{tpu_custom_call.1} parent=1 // loop_body
      %s20 = ssub.s32 %s15, 1
      %s21 = ssub.s32 %s15, 2
      %s22 = sadd.s32 %s15, 1
      %s24 = sadd.s32 %s23, 1
      %p27 = scmp.eq.s32.totalorder %s15, 1
      %p28 = scmp.ne.s32.totalorder %s23, %s25
      %p29 = scmp.eq.s32.totalorder %s15, 0
      %p30 = por %p28, %p29
      %p31 = scmp.ne.s32.totalorder %s23, %s25
      %p32 = scmp.eq.s32.totalorder %s20, 1
      %p33 = por %p31, %p32
      %p34 = scmp.ne.s32.totalorder %s25, %s26
      %p35 = scmp.eq.s32.totalorder %s20, 0
      %p36 = por %p34, %p35
      %p37 = scmp.ne.s32.totalorder %s25, %s26
      %p38 = scmp.eq.s32.totalorder %s21, 1
      %p39 = por %p37, %p38
      %p41 = scmp.ne.s32.totalorder %s26, %s40
      %p42 = scmp.eq.s32.totalorder %s21, 0
      %p43 = por %p41, %p42
      %s44 = ssub.s32 %s15, %s22
      %p45 = scmp.eq.s32.totalorder %s44, 0
      %s47 = sadd.s32 %s46, 1
      %s48 = scalar_select %p45, %s46, %s47
      %p51 = pneg %p45
      %p52 = scmp.eq.s32.totalorder %s15, 1
      %p53 = por %p51, %p52
      %p54 = scmp.ne.s32.totalorder %s46, %s49
      %p55 = scmp.eq.s32.totalorder %s15, 0
      %p56 = por %p54, %p55
      %p57 = scmp.ne.s32.totalorder %s46, %s49
      %p58 = scmp.eq.s32.totalorder %s20, 1
      %p59 = por %p57, %p58
      %p60 = scmp.ne.s32.totalorder %s49, %s50
      %p61 = scmp.eq.s32.totalorder %s20, 0
      %p62 = por %p60, %p61
      %p63 = scmp.ne.s32.totalorder %s49, %s50
      %p64 = scmp.eq.s32.totalorder %s21, 1
      %p65 = por %p63, %p64
      %p67 = scmp.ne.s32.totalorder %s50, %s66
      %p68 = scmp.eq.s32.totalorder %s21, 0
      %p69 = por %p67, %p68
      %s70 = ssub.s32 %s15, %s22
      %p71 = scmp.eq.s32.totalorder %s70, 0
      %s73 = sadd.s32 %s72, 1
      %s74 = scalar_select %p71, %s72, %s73
      %p77 = pneg %p71
      %p78 = scmp.eq.s32.totalorder %s15, 1
      %p79 = por %p77, %p78
      %p80 = scmp.ne.s32.totalorder %s72, %s75
      %p81 = scmp.eq.s32.totalorder %s15, 0
      %p82 = por %p80, %p81
      %p83 = scmp.ne.s32.totalorder %s72, %s75
      %p84 = scmp.eq.s32.totalorder %s20, 1
      %p85 = por %p83, %p84
      %p86 = scmp.ne.s32.totalorder %s75, %s76
      %p87 = scmp.eq.s32.totalorder %s20, 0
      %p88 = por %p86, %p87
      %p89 = scmp.ne.s32.totalorder %s75, %s76
      %p90 = scmp.eq.s32.totalorder %s21, 1
      %p91 = por %p89, %p90
      %p93 = scmp.ne.s32.totalorder %s76, %s92
      %p94 = scmp.eq.s32.totalorder %s21, 0
      %p95 = por %p93, %p94
      %p96 = scmp.le.s32.totalorder 1, %s15
      %p97 = scmp.lt.s32.totalorder %s15, 3
      %p98 = pnand %p96, %p97
      %p99 = pneg %p98
      // Predicated region
      $region9: #{tpu_custom_call.1} parent=5 // pred_check
        _
      $region10: #{tpu_custom_call.1} parent=5 // pred_check_branch
        %101 = sbr.rel (%p98) target = $region12
      $region11: #{tpu_custom_call.1} parent=5 // pred_region
        %s102 = ssub.s32 %s15, 1
        // Predicated region
        $region13: #{tpu_custom_call.1} parent=11 // pred_check
          %p103 = pneg %p36
        $region14: #{tpu_custom_call.1} parent=11 // pred_check_branch
          %105 = sbr.rel (%p103) target = $region16
        $region15: #{tpu_custom_call.1} parent=11 // pred_region
          %s107 = ssub.s32 16, 16
          %108 = vsyncadd [#allocation5], %s107
          %111 = dma.hbm_to_smem %s0, 16, [#allocation2], [#allocation5]
        $region16: #{tpu_custom_call.1} parent=11 // pred_fallthru
          _
      $region12: #{tpu_custom_call.1} parent=5 // pred_fallthru
        _
      %p112 = scmp.lt.s32.totalorder %s15, 2
      // Predicated region
      $region17: #{tpu_custom_call.1} parent=5 // pred_check
        %p113 = pneg %p112
      $region18: #{tpu_custom_call.1} parent=5 // pred_check_branch
        %115 = sbr.rel (%p113) target = $region20
      $region19: #{tpu_custom_call.1} parent=5 // pred_region
        // Predicated region
        $region21: #{tpu_custom_call.1} parent=19 // pred_check
          %p116 = pneg %p56
        $region22: #{tpu_custom_call.1} parent=19 // pred_check_branch
          %118 = sbr.rel (%p116) target = $region24
        $region23: #{tpu_custom_call.1} parent=19 // pred_region
          %s119 = sand.u32 %s46, 1
          %s120 = scalar_lea.sflag [#allocation3], %s119
          %s121 = sand.u32 %s46, 1
          %s122 = smul.addr %s121, 2
          %s123 = scalar_lea.vmem [#allocation6], %s122
          %s125 = ssub.s32 32, 32
          %126 = vsyncadd %s120, %s125
          %s127 = smul.addr %s15, 32
          %s128 = scalar_lea.hbm %s1, %s127
          %s130 = sshll.u32 %s123, 4
          %s131 = int_to_ptr.vmem [resolvable:$true] %s130
          %133 = dma.hbm_to_vmem [thread:$0]  %s128, 32, %s131, %s120
        $region24: #{tpu_custom_call.1} parent=19 // pred_fallthru
          _
      $region20: #{tpu_custom_call.1} parent=5 // pred_fallthru
        _
      %p134 = scmp.le.s32.totalorder 1, %s15
      %p135 = scmp.lt.s32.totalorder %s15, 3
      %p136 = pnand %p134, %p135
      %p137 = pneg %p136
      // Predicated region
      $region25: #{tpu_custom_call.1} parent=5 // pred_check
        _
      $region26: #{tpu_custom_call.1} parent=5 // pred_check_branch
        %139 = sbr.rel (%p136) target = $region28
      $region27: #{tpu_custom_call.1} parent=5 // pred_region
        %s140 = ssub.s32 %s15, 1
        // Predicated region
        $region29: #{tpu_custom_call.1} parent=27 // pred_check
          %p141 = pneg %p36
        $region30: #{tpu_custom_call.1} parent=27 // pred_check_branch
          %143 = sbr.rel (%p141) target = $region32
        $region31: #{tpu_custom_call.1} parent=27 // pred_region
          %144 = dma.done [#allocation5], 16
        $region32: #{tpu_custom_call.1} parent=27 // pred_fallthru
          _
        %s145 = sand.u32 %s49, 1
        %s146 = scalar_lea.sflag [#allocation3], %s145
        %s147 = sand.u32 %s49, 1
        %s148 = smul.addr %s147, 2
        %s149 = scalar_lea.vmem [#allocation6], %s148
        // Predicated region
        $region33: #{tpu_custom_call.1} parent=27 // pred_check
          %p150 = pneg %p62
        $region34: #{tpu_custom_call.1} parent=27 // pred_check_branch
          %152 = sbr.rel (%p150) target = $region36
        $region35: #{tpu_custom_call.1} parent=27 // pred_region
          %153 = dma.done %s146, 32
        $region36: #{tpu_custom_call.1} parent=27 // pred_fallthru
          _
        %154 = sfence
        %p155 = pneg %p36
        %p156 = pneg %p33
        %s157 = sand.u32 %s49, 1
        %s158 = scalar_lea.sflag [#allocation3], %s157
        %s159 = sand.u32 %s49, 1
        %s160 = smul.addr %s159, 2
        %s161 = scalar_lea.vmem [#allocation6], %s160
        %p162 = pneg %p62
        %p163 = pneg %p59
        %p164 = pneg %p88
        %p165 = pneg %p85
        %s166 = sand.u32 %s75, 1
        %s167 = scalar_lea.sflag [#allocation4], %s166
        %s168 = sand.u32 %s75, 1
        %s169 = scalar_lea.vmem [#allocation7], %s168
        %v170 = vld [vmem:[%s149] sm:$0x1]
        %v171 = vld [vmem:[%s149 + $0x1] sm:$0x1]
        %s172 = sld [smem:[#allocation2]]
        %s173 = sld [smem:[#allocation2 + $0x4]]
        %s174 = sld [smem:[#allocation2 + $0x8]]
        %s175 = sld [smem:[#allocation2 + $0xc]]
        %v176 = vstv %s172
        %v177 = vmul.f32 %v170, %v176
        %v178 = vstv %s173
        %v179 = vmul.f32 %v171, %v178
        %v180 = vadd.f32 %v177, %v179
        %v181 = vstv %s174
        %v182 = vadd.f32 %v180, %v181
        %v183 = vmax.f32 %v182, 0.0
        %v184 = vstv %s175
        %v185 = vmul.f32 %v183, %v184
        %v186 = vadd.f32 %v185, 0.0
        %s187 = sld [smem:[#allocation2 + $0x1]]
        %s188 = sld [smem:[#allocation2 + $0x5]]
        %s189 = sld [smem:[#allocation2 + $0x9]]
        %s190 = sld [smem:[#allocation2 + $0xd]]
        %v191 = vstv %s187
        %v192 = vmul.f32 %v170, %v191
        %v193 = vstv %s188
        %v194 = vmul.f32 %v171, %v193
        %v195 = vadd.f32 %v192, %v194
        %v196 = vstv %s189
        %v197 = vadd.f32 %v195, %v196
        %v198 = vmax.f32 %v197, 0.0
        %v199 = vstv %s190
        %v200 = vmul.f32 %v198, %v199
        %v201 = vadd.f32 %v186, %v200
        %s202 = sld [smem:[#allocation2 + $0x2]]
        %s203 = sld [smem:[#allocation2 + $0x6]]
        %s204 = sld [smem:[#allocation2 + $0xa]]
        %s205 = sld [smem:[#allocation2 + $0xe]]
        %v206 = vstv %s202
        %v207 = vmul.f32 %v170, %v206
        %v208 = vstv %s203
        %v209 = vmul.f32 %v171, %v208
        %v210 = vadd.f32 %v207, %v209
        %v211 = vstv %s204
        %v212 = vadd.f32 %v210, %v211
        %v213 = vmax.f32 %v212, 0.0
        %v214 = vstv %s205
        %v215 = vmul.f32 %v213, %v214
        %v216 = vadd.f32 %v201, %v215
        %s217 = sld [smem:[#allocation2 + $0x3]]
        %s218 = sld [smem:[#allocation2 + $0x7]]
        %s219 = sld [smem:[#allocation2 + $0xb]]
        %s220 = sld [smem:[#allocation2 + $0xf]]
        %v221 = vstv %s217
        %v222 = vmul.f32 %v170, %v221
        %v223 = vstv %s218
        %v224 = vmul.f32 %v171, %v223
        %v225 = vadd.f32 %v222, %v224
        %v226 = vstv %s219
        %v227 = vadd.f32 %v225, %v226
        %v228 = vmax.f32 %v227, 0.0
        %v229 = vstv %s220
        %v230 = vmul.f32 %v228, %v229
        %v231 = vadd.f32 %v216, %v230
        %s232 = sld [smem:[#allocation2 + $0x10]]
        %v233 = vstv %s232
        %v234 = vadd.f32 %v231, %v233
        %v235 = vxor.u32 %v234, 2147483648
        %v236 = vmul.f32 %v235, 1.442695
        %v237 = vpow.pop %v236
        %v238 = vadd.f32 %v237, 1.0
        %v239 = vrcp.pop %v238
        %v240 = vmul.f32 1.0, %v239
        %241 = vst [vmem:[%s169] sm:$0x1] %v240
        %s242 = sand.u32 %s75, 1
        %s243 = scalar_lea.sflag [#allocation4], %s242
        %s244 = sand.u32 %s75, 1
        %s245 = scalar_lea.vmem [#allocation7], %s244
        // Predicated region
        $region37: #{tpu_custom_call.1} parent=27 // pred_check
          %p246 = pneg %p85
        $region38: #{tpu_custom_call.1} parent=27 // pred_check_branch
          %248 = sbr.rel (%p246) target = $region40
        $region39: #{tpu_custom_call.1} parent=27 // pred_region
          %s250 = ssub.s32 16, 16
          %251 = vsyncadd %s243, %s250
          %s252 = smul.addr %s20, 16
          %s253 = scalar_lea.hbm %s2, %s252
          %s255 = sshll.u32 %s245, 4
          %s256 = int_to_ptr.vmem [resolvable:$true] %s255
          %258 = dma.vmem_to_hbm [thread:$0]  %s256, 16, %s253, %s243
        $region40: #{tpu_custom_call.1} parent=27 // pred_fallthru
          _
      $region28: #{tpu_custom_call.1} parent=5 // pred_fallthru
        _
      %p259 = scmp.le.s32.totalorder 2, %s15
      // Predicated region
      $region41: #{tpu_custom_call.1} parent=5 // pred_check
        %p260 = pneg %p259
      $region42: #{tpu_custom_call.1} parent=5 // pred_check_branch
        %262 = sbr.rel (%p260) target = $region44
      $region43: #{tpu_custom_call.1} parent=5 // pred_region
        %s263 = ssub.s32 %s15, 2
        // Predicated region
        $region45: #{tpu_custom_call.1} parent=43 // pred_check
          %p264 = pneg %p91
        $region46: #{tpu_custom_call.1} parent=43 // pred_check_branch
          %266 = sbr.rel (%p264) target = $region48
        $region47: #{tpu_custom_call.1} parent=43 // pred_region
          %s267 = sand.u32 %s76, 1
          %s268 = scalar_lea.sflag [#allocation4], %s267
          %s269 = sand.u32 %s76, 1
          %s270 = scalar_lea.vmem [#allocation7], %s269
          %271 = dma.done %s268, 16
        $region48: #{tpu_custom_call.1} parent=43 // pred_fallthru
          _
      $region44: #{tpu_custom_call.1} parent=5 // pred_fallthru
        _
    $region6: #{tpu_custom_call.1} parent=1 // loop_footer
      %s19 = sadd.s32 1, %s15
    $region7: #{tpu_custom_call.1} parent=1 // loop_footer_branch
      %14 = sbr.rel target = $region3
    $region8: #{tpu_custom_call.1} parent=1 // loop_exit
      _
    %272 = vsyncpa [#allocation3], 1
    %s273 = scalar_lea.sflag [#allocation3], 1
    %274 = vsyncpa %s273, 1
    %275 = vsyncpa [#allocation4], 1
    %s276 = scalar_lea.sflag [#allocation4], 1
    %277 = vsyncpa %s276, 1
    %278 = vsyncpa [#allocation5], 1
    %s279 = scalar_lea.sflag [#allocation5], 1
    %280 = vsyncpa %s279, 1

</llo_original>
